<compile_context>
chip_gen: v6e
topology: v6e:2x2x1
jax: 0.10.0
libtpu: 0.0.40
codegen_flags: <defaults>
</compile_context>

<pallas_src>
import functools

import jax
import jax.numpy as jnp
from jax import lax
from jax.experimental import pallas as pl
from jax.experimental.pallas import tpu as pltpu


# ----------------------------------------------------------------------------
# Kernel A: the fc MLP, transposed (features on sublanes, rows on lanes).
#   y^T = W2 @ leaky_relu( bn_scale * (W1 @ x^T + b1) + bn_shift ) + b2
# ----------------------------------------------------------------------------
def _fc_kernel(xT_ref, w1_ref, b1_ref, s_ref, t_ref, w2_ref, b2_ref, oT_ref):
    x = xT_ref[...].astype(jnp.float32)                       # (Cin, TM)  rows in lanes
    h = jnp.dot(w1_ref[...], x, preferred_element_type=jnp.float32) + b1_ref[...]
    h = h * s_ref[...] + t_ref[...]                           # BatchNorm1d (eval, folded)
    h = jnp.where(h >= 0, h, 0.01 * h)                        # LeakyReLU(negative_slope=0.01)
    y = jnp.dot(w2_ref[...], h, preferred_element_type=jnp.float32) + b2_ref[...]
    oT_ref[...] = y.astype(oT_ref.dtype)


def fc_forward_T(xT, w1, b1, bn_scale, bn_shift, w2, b2, *, tile_m=512):
    """xT: (Cin, M) with rows in the lane dim. Returns (Cout, M) float32."""
    cin, m = xT.shape
    cout = w2.shape[0]
    tm = min(tile_m, m)
    assert m % tm == 0 and tm % 128 == 0, "row count must tile by multiples of 128"

    col = lambda r: (0, r)
    full = lambda r: (0, 0)
    return pl.pallas_call(
        _fc_kernel,
        out_shape=jax.ShapeDtypeStruct((cout, m), jnp.float32),
        grid_spec=pltpu.PrefetchScalarGridSpec(
            num_scalar_prefetch=0,
            grid=(m // tm,),
            in_specs=[
                pl.BlockSpec((cin, tm), col),      # x^T tile, rows in lanes
                pl.BlockSpec((cin, cin), full),    # W1 (out,in)
                pl.BlockSpec((cin, 1), full),      # b1
                pl.BlockSpec((cin, 1), full),      # bn scale
                pl.BlockSpec((cin, 1), full),      # bn shift
                pl.BlockSpec((cout, cin), full),   # W2 (out,in)
                pl.BlockSpec((cout, 1), full),     # b2
            ],
            out_specs=pl.BlockSpec((cout, tm), col),
        ),
        compiler_params=pltpu.CompilerParams(dimension_semantics=("parallel",)),
    )(xT, w1, b1, bn_scale, bn_shift, w2, b2)


# ----------------------------------------------------------------------------
# Kernel B: F.normalize + InfoNCE(temperature=1, reduction='none') + per-pair cosine.
#   queries (fus) row-major (Mp, D), keys (inp) transposed (D, Mp); tiled over query rows.
# ----------------------------------------------------------------------------
def _nce_kernel(fus_ref, inpT_ref, dist_ref, loss_ref, *, m_valid, tile_r):
    r = pl.program_id(0)

    q = fus_ref[...].astype(jnp.float32)            # (TR, D)   queries
    k = inpT_ref[...].astype(jnp.float32)           # (D, Mp)   all keys, lanes = key index

    # F.normalize(x, dim=1): x / max(||x||, 1e-12)
    qn = q / jnp.maximum(jnp.sqrt(jnp.sum(q * q, axis=1, keepdims=True)), 1e-12)
    kn = k / jnp.maximum(jnp.sqrt(jnp.sum(k * k, axis=0, keepdims=True)), 1e-12)

    # logits[i, j] = <fus_n[i], inp_n[j]>  -> MXU, keys fill the lane dim.
    logits = jnp.dot(qn, kn, preferred_element_type=jnp.float32)   # (TR, Mp)

    tr, mp = logits.shape
    row_g = r * tile_r + lax.broadcasted_iota(jnp.int32, (tr, mp), 0)
    col_g = lax.broadcasted_iota(jnp.int32, (tr, mp), 1)

    # diagonal == per-pair cosine similarity (this is both 'dist' and the CE target logit)
    diag = jnp.sum(jnp.where(col_g == row_g, logits, 0.0), axis=1, keepdims=True)   # (TR, 1)

    # masked log-sum-exp over the m_valid real keys (exclude lane padding)
    neg = jnp.float32(-1e30)
    ml = jnp.where(col_g < m_valid, logits, neg)
    mx = jnp.max(ml, axis=1, keepdims=True)
    lse = mx + jnp.log(jnp.sum(jnp.exp(ml - mx), axis=1, keepdims=True))            # (TR, 1)

    dist_ref[...] = diag
    loss_ref[...] = lse - diag                      # cross_entropy(logits, arange), reduction='none'


def info_nce_and_dist(fus_rows, inpT, m_valid, *, tile_r=256):
    """fus_rows: (Mp, D) queries; inpT: (D, Mp) keys. Returns (dist (Mp,1), loss (Mp,1))."""
    mp, d = fus_rows.shape
    assert inpT.shape == (d, mp)
    tr = min(tile_r, mp)
    while mp % tr != 0:       # fall back to a divisor of mp (mp is a multiple of 128)
        tr //= 2
    assert tr % 8 == 0 and mp % tr == 0

    dist, loss = pl.pallas_call(
        functools.partial(_nce_kernel, m_valid=m_valid, tile_r=tr),
        out_shape=(jax.ShapeDtypeStruct((mp, 1), jnp.float32),
                   jax.ShapeDtypeStruct((mp, 1), jnp.float32)),
        grid_spec=pltpu.PrefetchScalarGridSpec(
            num_scalar_prefetch=0,
            grid=(mp // tr,),
            in_specs=[
                pl.BlockSpec((tr, d), lambda r: (r, 0)),       # query row block
                pl.BlockSpec((d, mp), lambda r: (0, 0)),       # all keys (VMEM-resident)
            ],
            out_specs=[
                pl.BlockSpec((tr, 1), lambda r: (r, 0)),
                pl.BlockSpec((tr, 1), lambda r: (r, 0)),
            ],
        ),
        compiler_params=pltpu.CompilerParams(dimension_semantics=("parallel",)),
    )(fus_rows, inpT)
    return dist, loss


# ----------------------------------------------------------------------------
# Full forward (sobel=False path of MI_Maximization_reg).
# ----------------------------------------------------------------------------
def mi_maximization_reg_forward(inp_feat, fus_feat, params, sample_idx,
                                *, input_size, num_samples):
    N, C, H, W = inp_feat.shape
    S = input_size
    assert H % S == 0 and W % S == 0, "adaptive pool implemented for integer factors"
    fh, fw = H // S, W // S

    def pool_and_flatten_T(x):
        # AdaptiveAvgPool2d((S,S)) + permute(0,2,3,1).view(-1,C), presented transposed:
        # (C, N*S*S) with the row index n*S*S + h*S + w in the lane dimension.
        p = x.reshape(N, C, S, fh, S, fw).mean(axis=(3, 5))        # (N, C, S, S)
        return jnp.transpose(p, (1, 0, 2, 3)).reshape(C, N * S * S)

    inp_T = pool_and_flatten_T(inp_feat)
    fus_T = pool_and_flatten_T(fus_feat)
    M = N * S * S

    # One fused fc pass over both streams (rows concatenated along the lane axis).
    xT = jnp.concatenate([inp_T, fus_T], axis=1)                   # (C, 2M)
    yT = fc_forward_T(xT, params["w1"], params["b1"],
                      params["bn_scale"], params["bn_shift"],
                      params["w2"], params["b2"])                  # (latent, 2M)
    inp_fc_T, fus_fc_T = yT[:, :M], yT[:, M:]

    # torch.gather with the multinomial indices (same indices for every batch element).
    cols = (jnp.arange(N, dtype=jnp.int32)[:, None] * (S * S)
            + sample_idx.astype(jnp.int32)[None, :]).reshape(-1)   # (N*num_samples,)
    inp_sel_T = jnp.take(inp_fc_T, cols, axis=1)                   # (latent, M2) keys
    fus_sel = jnp.take(fus_fc_T, cols, axis=1).T                   # (M2, latent) queries

    M2 = N * num_samples
    Mp = ((M2 + 127) // 128) * 128
    pad = Mp - M2
    if pad:
        inp_sel_T = jnp.pad(inp_sel_T, ((0, 0), (0, pad)))
        fus_sel = jnp.pad(fus_sel, ((0, pad), (0, 0)))

    dist, loss = info_nce_and_dist(fus_sel, inp_sel_T, M2)
    return {"latent_loss": loss[:M2, 0], "dist": dist[:M2, :]}


# ----------------------------------------------------------------------------
# Pure-JAX reference mirroring the PyTorch ops (for correctness check).
# ----------------------------------------------------------------------------
def _reference(inp_feat, fus_feat, p, sample_idx, *, input_size, num_samples):
    N, C, H, W = inp_feat.shape
    S = input_size

    def pool(x):
        return x.reshape(N, C, S, H // S, S, W // S).mean(axis=(3, 5))

    def fc(x):  # x: (M, C)
        x = x @ p["w1"].T + p["b1"]
        x = (x - p["bn_mean"]) / jnp.sqrt(p["bn_var"] + 1e-5)
        x = x * p["bn_gamma"] + p["bn_beta"]
        x = jnp.where(x >= 0, x, 0.01 * x)
        return x @ p["w2"].T + p["b2"]

    def flat(x):
        return jnp.transpose(pool(x), (0, 2, 3, 1)).reshape(-1, C)

    latent = p["w2"].shape[0]
    inp = fc(flat(inp_feat)).reshape(N, S * S, latent)
    fus = fc(flat(fus_feat)).reshape(N, S * S, latent)
    inp_sel = jnp.take(inp, sample_idx, axis=1).reshape(N * num_samples, latent)
    fus_sel = jnp.take(fus, sample_idx, axis=1).reshape(N * num_samples, latent)

    def l2n(v):
        return v / jnp.maximum(jnp.linalg.norm(v, axis=1, keepdims=True), 1e-12)

    q, k = l2n(fus_sel), l2n(inp_sel)
    logits = q @ k.T
    dist = jnp.sum(q * k, axis=1, keepdims=True)
    loss = jax.scipy.special.logsumexp(logits, axis=1) - jnp.diag(logits)
    return {"latent_loss": loss, "dist": dist}


if __name__ == "__main__":
    key = jax.random.PRNGKey(0)
    (k_inp, k_fus, k_w1, k_b1, k_g, k_bt, k_m, k_v, k_w2, k_b2, k_idx) = jax.random.split(key, 11)

    # Small shapes consistent with the module: batch=2, channels=4, spatial 32 pooled to 16
    # (16*16 = 256 positions per image >= num_samples = 200, so the module's try-branch runs).
    N, C, H, W = 2, 4, 32, 32
    input_size = 16
    latent_size = 32
    num_samples = 200

    inp_feat = jax.random.normal(k_inp, (N, C, H, W), dtype=jnp.float32)
    fus_feat = jax.random.normal(k_fus, (N, C, H, W), dtype=jnp.float32)

    # fc parameters (torch.nn.Linear weights are (out, in)); BatchNorm1d eval-mode stats.
    w1 = jax.random.normal(k_w1, (C, C), dtype=jnp.float32) * 0.5
    b1 = jax.random.normal(k_b1, (C,), dtype=jnp.float32) * 0.1
    bn_gamma = 1.0 + 0.1 * jax.random.normal(k_g, (C,), dtype=jnp.float32)
    bn_beta = 0.1 * jax.random.normal(k_bt, (C,), dtype=jnp.float32)
    bn_mean = 0.1 * jax.random.normal(k_m, (C,), dtype=jnp.float32)
    bn_var = jnp.abs(1.0 + 0.1 * jax.random.normal(k_v, (C,), dtype=jnp.float32))
    w2 = jax.random.normal(k_w2, (latent_size, C), dtype=jnp.float32) * 0.5
    b2 = jax.random.normal(k_b2, (latent_size,), dtype=jnp.float32) * 0.1

    # torch.multinomial(ones(S*S), num_samples): uniform sampling without replacement.
    sample_idx = jax.random.choice(k_idx, input_size * input_size,
                                   shape=(num_samples,), replace=False)

    bn_scale = bn_gamma / jnp.sqrt(bn_var + 1e-5)
    bn_shift = bn_beta - bn_mean * bn_scale
    params = {
        "w1": w1, "b1": b1.reshape(C, 1),
        "bn_scale": bn_scale.reshape(C, 1), "bn_shift": bn_shift.reshape(C, 1),
        "w2": w2, "b2": b2.reshape(latent_size, 1),
    }

    out = mi_maximization_reg_forward(inp_feat, fus_feat, params, sample_idx,
                                      input_size=input_size, num_samples=num_samples)
    out = jax.block_until_ready(out)

    ref = _reference(inp_feat, fus_feat,
                     {"w1": w1, "b1": b1, "bn_gamma": bn_gamma, "bn_beta": bn_beta,
                      "bn_mean": bn_mean, "bn_var": bn_var, "w2": w2, "b2": b2},
                     sample_idx, input_size=input_size, num_samples=num_samples)

    M2 = N * num_samples
    assert out["latent_loss"].shape == (M2,)
    assert out["dist"].shape == (M2, 1)
    assert jnp.allclose(out["latent_loss"], ref["latent_loss"], atol=1e-4, rtol=1e-4), "latent_loss mismatch"
    assert jnp.allclose(out["dist"], ref["dist"], atol=1e-4, rtol=1e-4), "dist mismatch"

    print("KERNEL_OK")
</pallas_src>

<mosaic_0001>
module attributes {stable_mosaic.version = 11 : i64} {
  func.func @_fc_kernel(%arg0: i32, %arg1: memref<4x512xf32, #tpu.memory_space<vmem>>, %arg2: memref<4x4xf32, #tpu.memory_space<vmem>>, %arg3: memref<4x1xf32, #tpu.memory_space<vmem>>, %arg4: memref<4x1xf32, #tpu.memory_space<vmem>>, %arg5: memref<4x1xf32, #tpu.memory_space<vmem>>, %arg6: memref<32x4xf32, #tpu.memory_space<vmem>>, %arg7: memref<32x1xf32, #tpu.memory_space<vmem>>, %arg8: memref<32x512xf32, #tpu.memory_space<vmem>>) attributes {dimension_semantics = [#tpu.dimension_semantics<parallel>], iteration_bounds = array<i64: 2>, scalar_prefetch = 0 : i64, scratch_operands = 0 : i64, tpu.core_type = #tpu.core_type<tc>, window_params = [{transform_indices = @transform_0, window_bounds = array<i64: 4, 512>}, {pipeline_mode = #tpu.pipeline_mode<synchronous>, transform_indices = @transform_1, window_bounds = array<i64: 4, 4>}, {pipeline_mode = #tpu.pipeline_mode<synchronous>, transform_indices = @transform_2, window_bounds = array<i64: 4, 1>}, {pipeline_mode = #tpu.pipeline_mode<synchronous>, transform_indices = @transform_3, window_bounds = array<i64: 4, 1>}, {pipeline_mode = #tpu.pipeline_mode<synchronous>, transform_indices = @transform_4, window_bounds = array<i64: 4, 1>}, {pipeline_mode = #tpu.pipeline_mode<synchronous>, transform_indices = @transform_5, window_bounds = array<i64: 32, 4>}, {pipeline_mode = #tpu.pipeline_mode<synchronous>, transform_indices = @transform_6, window_bounds = array<i64: 32, 1>}, {transform_indices = @transform_7, window_bounds = array<i64: 32, 512>}]} {
    %c0 = arith.constant 0 : index
    %c0_0 = arith.constant 0 : index
    %0 = vector.load %arg1[%c0, %c0_0] : memref<4x512xf32, #tpu.memory_space<vmem>>, vector<4x512xf32>
    %c0_1 = arith.constant 0 : index
    %c0_2 = arith.constant 0 : index
    %1 = vector.load %arg2[%c0_1, %c0_2] : memref<4x4xf32, #tpu.memory_space<vmem>>, vector<4x4xf32>
    %cst = arith.constant dense<0.000000e+00> : vector<4x512xf32>
    %2 = tpu.matmul %1, %0, %cst {dimension_numbers = #tpu.dot_dimension_numbers<[1], [0], [0], [1], [0, 0, 1, 1], [], []>} : vector<4x4xf32>, vector<4x512xf32>, vector<4x512xf32> -> vector<4x512xf32>
    %c0_3 = arith.constant 0 : index
    %c0_4 = arith.constant 0 : index
    %3 = vector.load %arg3[%c0_3, %c0_4] : memref<4x1xf32, #tpu.memory_space<vmem>>, vector<4x1xf32>
    %4 = vector.broadcast %3 : vector<4x1xf32> to vector<4x512xf32>
    %5 = arith.addf %2, %4 : vector<4x512xf32>
    %c0_5 = arith.constant 0 : index
    %c0_6 = arith.constant 0 : index
    %6 = vector.load %arg4[%c0_5, %c0_6] : memref<4x1xf32, #tpu.memory_space<vmem>>, vector<4x1xf32>
    %7 = vector.broadcast %6 : vector<4x1xf32> to vector<4x512xf32>
    %8 = arith.mulf %5, %7 : vector<4x512xf32>
    %c0_7 = arith.constant 0 : index
    %c0_8 = arith.constant 0 : index
    %9 = vector.load %arg5[%c0_7, %c0_8] : memref<4x1xf32, #tpu.memory_space<vmem>>, vector<4x1xf32>
    %10 = vector.broadcast %9 : vector<4x1xf32> to vector<4x512xf32>
    %11 = arith.addf %8, %10 : vector<4x512xf32>
    %cst_9 = arith.constant 0.000000e+00 : f32
    %12 = vector.broadcast %cst_9 : f32 to vector<4x512xf32>
    %13 = arith.cmpf oge, %11, %12 : vector<4x512xf32>
    %cst_10 = arith.constant 0.00999999977 : f32
    %14 = vector.broadcast %cst_10 : f32 to vector<4x512xf32>
    %15 = arith.mulf %14, %11 : vector<4x512xf32>
    %16 = arith.select %13, %11, %15 : vector<4x512xi1>, vector<4x512xf32>
    %c0_11 = arith.constant 0 : index
    %c0_12 = arith.constant 0 : index
    %17 = vector.load %arg6[%c0_11, %c0_12] : memref<32x4xf32, #tpu.memory_space<vmem>>, vector<32x4xf32>
    %cst_13 = arith.constant dense<0.000000e+00> : vector<32x512xf32>
    %18 = tpu.matmul %17, %16, %cst_13 {dimension_numbers = #tpu.dot_dimension_numbers<[1], [0], [0], [1], [0, 0, 1, 1], [], []>} : vector<32x4xf32>, vector<4x512xf32>, vector<32x512xf32> -> vector<32x512xf32>
    %c0_14 = arith.constant 0 : index
    %c0_15 = arith.constant 0 : index
    %19 = vector.load %arg7[%c0_14, %c0_15] : memref<32x1xf32, #tpu.memory_space<vmem>>, vector<32x1xf32>
    %20 = vector.broadcast %19 : vector<32x1xf32> to vector<32x512xf32>
    %21 = arith.addf %18, %20 : vector<32x512xf32>
    %c0_16 = arith.constant 0 : index
    %c0_17 = arith.constant 0 : index
    %22 = vector.load %arg8[%c0_16, %c0_17] : memref<32x512xf32, #tpu.memory_space<vmem>>, vector<32x512xf32>
    tpu.vector_store %arg8[%c0_16, %c0_17], %21 {strides = array<i32>} : memref<32x512xf32, #tpu.memory_space<vmem>>, vector<32x512xf32>,
    return
  }
  func.func @transform_0(%arg0: i32) -> (i32, i32) {
    %c0_i32 = arith.constant 0 : i32
    %c0_i32_0 = arith.constant 0 : i32
    return %c0_i32, %arg0 : i32, i32
  }
  func.func @transform_1(%arg0: i32) -> (i32, i32) {
    %c0_i32 = arith.constant 0 : i32
    %c0_i32_0 = arith.constant 0 : i32
    %c0_i32_1 = arith.constant 0 : i32
    return %c0_i32, %c0_i32_0 : i32, i32
  }
  func.func @transform_2(%arg0: i32) -> (i32, i32) {
    %c0_i32 = arith.constant 0 : i32
    %c0_i32_0 = arith.constant 0 : i32
    %c0_i32_1 = arith.constant 0 : i32
    return %c0_i32, %c0_i32_0 : i32, i32
  }
  func.func @transform_3(%arg0: i32) -> (i32, i32) {
    %c0_i32 = arith.constant 0 : i32
    %c0_i32_0 = arith.constant 0 : i32
    %c0_i32_1 = arith.constant 0 : i32
    return %c0_i32, %c0_i32_0 : i32, i32
  }
  func.func @transform_4(%arg0: i32) -> (i32, i32) {
    %c0_i32 = arith.constant 0 : i32
    %c0_i32_0 = arith.constant 0 : i32
    %c0_i32_1 = arith.constant 0 : i32
    return %c0_i32, %c0_i32_0 : i32, i32
  }
  func.func @transform_5(%arg0: i32) -> (i32, i32) {
    %c0_i32 = arith.constant 0 : i32
    %c0_i32_0 = arith.constant 0 : i32
    %c0_i32_1 = arith.constant 0 : i32
    return %c0_i32, %c0_i32_0 : i32, i32
  }
  func.func @transform_6(%arg0: i32) -> (i32, i32) {
    %c0_i32 = arith.constant 0 : i32
    %c0_i32_0 = arith.constant 0 : i32
    %c0_i32_1 = arith.constant 0 : i32
    return %c0_i32, %c0_i32_0 : i32, i32
  }
  func.func @transform_7(%arg0: i32) -> (i32, i32) {
    %c0_i32 = arith.constant 0 : i32
    %c0_i32_0 = arith.constant 0 : i32
    return %c0_i32, %arg0 : i32, i32
  }
}

</mosaic_0001>

<llo_original>
// kernel: tpu_custom_call.1
$region0: #{tpu_custom_call.1}
  #allocation0 [shape = 'u32[]', space=smem, size = 0x4, offset = 0x4, fixed_abs, tag = 'smem constant byte address 0x4 - core index']
  #allocation1 [shape = 'u32[144,128]{1,0:T(1,128)}', space=vmem, size = 0x12000, scoped, tag = 'internal scratch']
  %s0 = inlined_call_operand.vmem [shape: f32[4,1024], index: 0, kind: input, shape index: {}]
  %s1 = inlined_call_operand.vmem [shape: f32[4,4], index: 1, kind: input, shape index: {}]
  %s2 = inlined_call_operand.vmem [shape: f32[4,1], index: 2, kind: input, shape index: {}]
  %s3 = inlined_call_operand.vmem [shape: f32[4,1], index: 3, kind: input, shape index: {}]
  %s4 = inlined_call_operand.vmem [shape: f32[4,1], index: 4, kind: input, shape index: {}]
  %s5 = inlined_call_operand.vmem [shape: f32[32,4], index: 5, kind: input, shape index: {}]
  %s6 = inlined_call_operand.vmem [shape: f32[32,1], index: 6, kind: input, shape index: {}]
  %s7 = inlined_call_operand.hbm [shape: f32[32,1024], index: 7, kind: output, shape index: {}]
  %s8 = sld [smem:[#allocation0]]
  $region61: #{tpu_custom_call.1} parent=0
    _
  %s10 = ssub.s32 1, %s8
  %s11 = scalar_select 0, %s10, %s8
  $region1: #{tpu_custom_call.1} parent=0
    #allocation2 [shape = 'u8[131072]{0}', space=vmem, size = 0x20000, scoped, tag = 'output window, operand 0']
    #allocation3 [shape = 's32[2]{0}', space=sflag, size = 0x8, scoped, tag = 'scoped memory for tpu_custom_call.1']
    %12 = vsyncpa [#allocation3], 0
    %s13 = scalar_lea.sflag [#allocation3], 1
    %14 = vsyncpa %s13, 0
    loop: start=0, step=1, limit=4
    $region2: #{tpu_custom_call.1} parent=1 // loop_pre_header
      _
    $region3: #{tpu_custom_call.1} parent=1 // loop_header
      %s16 = sphi 0, %s20
      %p17 = scmp.ge.s32.totalorder %s16, 4
      %s26 = sphi 0, %s28
      %s29 = sphi 0, %s26
      %s30 = sphi 0, %s29
      %s46 = sphi 0, %s30
      %s50 = sphi 0, %s50
      %s52 = sphi 0, %s50
      %s53 = sphi 0, %s52
      %s67 = sphi 0, %s53
      %s71 = sphi 0, %s71
      %s73 = sphi 0, %s71
      %s74 = sphi 0, %s73
      %s88 = sphi 0, %s74
      %s92 = sphi 0, %s92
      %s94 = sphi 0, %s92
      %s95 = sphi 0, %s94
      %s109 = sphi 0, %s95
      %s113 = sphi 0, %s113
      %s115 = sphi 0, %s113
      %s116 = sphi 0, %s115
      %s130 = sphi 0, %s116
      %s134 = sphi 0, %s134
      %s136 = sphi 0, %s134
      %s137 = sphi 0, %s136
      %s151 = sphi 0, %s137
      %s155 = sphi 0, %s155
      %s157 = sphi 0, %s155
      %s158 = sphi 0, %s157
      %s172 = sphi 0, %s158
      %s178 = sphi 0, %s180
      %s181 = sphi 0, %s178
      %s182 = sphi 0, %s181
      %s198 = sphi 0, %s182
    $region4: #{tpu_custom_call.1} parent=1 // loop_header_branch
      %19 = sbr.rel (%p17) target = $region8
    $region5: #{tpu_custom_call.1} parent=1 // loop_body
      %s21 = ssub.s32 %s16, 1
      %s22 = ssub.s32 %s16, 2
      %s23 = sadd.s32 %s16, 1
      %s24 = ssub.s32 %s16, %s23
      %p25 = scmp.eq.s32.totalorder %s24, 0
      %s27 = sadd.s32 %s26, 1
      %s28 = scalar_select %p25, %s26, %s27
      %p31 = pneg %p25
      %p32 = scmp.eq.s32.totalorder %s16, 1
      %p33 = por %p31, %p32
      %p34 = scmp.ne.s32.totalorder %s26, %s29
      %p35 = scmp.eq.s32.totalorder %s16, 0
      %p36 = por %p34, %p35
      %p37 = scmp.ne.s32.totalorder %s26, %s29
      %p38 = scmp.eq.s32.totalorder %s21, 1
      %p39 = por %p37, %p38
      %p40 = scmp.ne.s32.totalorder %s29, %s30
      %p41 = scmp.eq.s32.totalorder %s21, 0
      %p42 = por %p40, %p41
      %p43 = scmp.ne.s32.totalorder %s29, %s30
      %p44 = scmp.eq.s32.totalorder %s22, 1
      %p45 = por %p43, %p44
      %p47 = scmp.ne.s32.totalorder %s30, %s46
      %p48 = scmp.eq.s32.totalorder %s22, 0
      %p49 = por %p47, %p48
      %s51 = sadd.s32 %s50, 1
      %p54 = scmp.eq.s32.totalorder %s16, 1
      %p55 = scmp.ne.s32.totalorder %s50, %s52
      %p56 = scmp.eq.s32.totalorder %s16, 0
      %p57 = por %p55, %p56
      %p58 = scmp.ne.s32.totalorder %s50, %s52
      %p59 = scmp.eq.s32.totalorder %s21, 1
      %p60 = por %p58, %p59
      %p61 = scmp.ne.s32.totalorder %s52, %s53
      %p62 = scmp.eq.s32.totalorder %s21, 0
      %p63 = por %p61, %p62
      %p64 = scmp.ne.s32.totalorder %s52, %s53
      %p65 = scmp.eq.s32.totalorder %s22, 1
      %p66 = por %p64, %p65
      %p68 = scmp.ne.s32.totalorder %s53, %s67
      %p69 = scmp.eq.s32.totalorder %s22, 0
      %p70 = por %p68, %p69
      %s72 = sadd.s32 %s71, 1
      %p75 = scmp.eq.s32.totalorder %s16, 1
      %p76 = scmp.ne.s32.totalorder %s71, %s73
      %p77 = scmp.eq.s32.totalorder %s16, 0
      %p78 = por %p76, %p77
      %p79 = scmp.ne.s32.totalorder %s71, %s73
      %p80 = scmp.eq.s32.totalorder %s21, 1
      %p81 = por %p79, %p80
      %p82 = scmp.ne.s32.totalorder %s73, %s74
      %p83 = scmp.eq.s32.totalorder %s21, 0
      %p84 = por %p82, %p83
      %p85 = scmp.ne.s32.totalorder %s73, %s74
      %p86 = scmp.eq.s32.totalorder %s22, 1
      %p87 = por %p85, %p86
      %p89 = scmp.ne.s32.totalorder %s74, %s88
      %p90 = scmp.eq.s32.totalorder %s22, 0
      %p91 = por %p89, %p90
      %s93 = sadd.s32 %s92, 1
      %p96 = scmp.eq.s32.totalorder %s16, 1
      %p97 = scmp.ne.s32.totalorder %s92, %s94
      %p98 = scmp.eq.s32.totalorder %s16, 0
      %p99 = por %p97, %p98
      %p100 = scmp.ne.s32.totalorder %s92, %s94
      %p101 = scmp.eq.s32.totalorder %s21, 1
      %p102 = por %p100, %p101
      %p103 = scmp.ne.s32.totalorder %s94, %s95
      %p104 = scmp.eq.s32.totalorder %s21, 0
      %p105 = por %p103, %p104
      %p106 = scmp.ne.s32.totalorder %s94, %s95
      %p107 = scmp.eq.s32.totalorder %s22, 1
      %p108 = por %p106, %p107
      %p110 = scmp.ne.s32.totalorder %s95, %s109
      %p111 = scmp.eq.s32.totalorder %s22, 0
      %p112 = por %p110, %p111
      %s114 = sadd.s32 %s113, 1
      %p117 = scmp.eq.s32.totalorder %s16, 1
      %p118 = scmp.ne.s32.totalorder %s113, %s115
      %p119 = scmp.eq.s32.totalorder %s16, 0
      %p120 = por %p118, %p119
      %p121 = scmp.ne.s32.totalorder %s113, %s115
      %p122 = scmp.eq.s32.totalorder %s21, 1
      %p123 = por %p121, %p122
      %p124 = scmp.ne.s32.totalorder %s115, %s116
      %p125 = scmp.eq.s32.totalorder %s21, 0
      %p126 = por %p124, %p125
      %p127 = scmp.ne.s32.totalorder %s115, %s116
      %p128 = scmp.eq.s32.totalorder %s22, 1
      %p129 = por %p127, %p128
      %p131 = scmp.ne.s32.totalorder %s116, %s130
      %p132 = scmp.eq.s32.totalorder %s22, 0
      %p133 = por %p131, %p132
      %s135 = sadd.s32 %s134, 1
      %p138 = scmp.eq.s32.totalorder %s16, 1
      %p139 = scmp.ne.s32.totalorder %s134, %s136
      %p140 = scmp.eq.s32.totalorder %s16, 0
      %p141 = por %p139, %p140
      %p142 = scmp.ne.s32.totalorder %s134, %s136
      %p143 = scmp.eq.s32.totalorder %s21, 1
      %p144 = por %p142, %p143
      %p145 = scmp.ne.s32.totalorder %s136, %s137
      %p146 = scmp.eq.s32.totalorder %s21, 0
      %p147 = por %p145, %p146
      %p148 = scmp.ne.s32.totalorder %s136, %s137
      %p149 = scmp.eq.s32.totalorder %s22, 1
      %p150 = por %p148, %p149
      %p152 = scmp.ne.s32.totalorder %s137, %s151
      %p153 = scmp.eq.s32.totalorder %s22, 0
      %p154 = por %p152, %p153
      %s156 = sadd.s32 %s155, 1
      %p159 = scmp.eq.s32.totalorder %s16, 1
      %p160 = scmp.ne.s32.totalorder %s155, %s157
      %p161 = scmp.eq.s32.totalorder %s16, 0
      %p162 = por %p160, %p161
      %p163 = scmp.ne.s32.totalorder %s155, %s157
      %p164 = scmp.eq.s32.totalorder %s21, 1
      %p165 = por %p163, %p164
      %p166 = scmp.ne.s32.totalorder %s157, %s158
      %p167 = scmp.eq.s32.totalorder %s21, 0
      %p168 = por %p166, %p167
      %p169 = scmp.ne.s32.totalorder %s157, %s158
      %p170 = scmp.eq.s32.totalorder %s22, 1
      %p171 = por %p169, %p170
      %p173 = scmp.ne.s32.totalorder %s158, %s172
      %p174 = scmp.eq.s32.totalorder %s22, 0
      %p175 = por %p173, %p174
      %s176 = ssub.s32 %s16, %s23
      %p177 = scmp.eq.s32.totalorder %s176, 0
      %s179 = sadd.s32 %s178, 1
      %s180 = scalar_select %p177, %s178, %s179
      %p183 = pneg %p177
      %p184 = scmp.eq.s32.totalorder %s16, 1
      %p185 = por %p183, %p184
      %p186 = scmp.ne.s32.totalorder %s178, %s181
      %p187 = scmp.eq.s32.totalorder %s16, 0
      %p188 = por %p186, %p187
      %p189 = scmp.ne.s32.totalorder %s178, %s181
      %p190 = scmp.eq.s32.totalorder %s21, 1
      %p191 = por %p189, %p190
      %p192 = scmp.ne.s32.totalorder %s181, %s182
      %p193 = scmp.eq.s32.totalorder %s21, 0
      %p194 = por %p192, %p193
      %p195 = scmp.ne.s32.totalorder %s181, %s182
      %p196 = scmp.eq.s32.totalorder %s22, 1
      %p197 = por %p195, %p196
      %p199 = scmp.ne.s32.totalorder %s182, %s198
      %p200 = scmp.eq.s32.totalorder %s22, 0
      %p201 = por %p199, %p200
      %p202 = scmp.le.s32.totalorder 1, %s16
      %p203 = scmp.lt.s32.totalorder %s16, 3
      %p204 = pnand %p202, %p203
      %p205 = pneg %p204
      // Predicated region
      $region9: #{tpu_custom_call.1} parent=5 // pred_check
        _
      $region10: #{tpu_custom_call.1} parent=5 // pred_check_branch
        %207 = sbr.rel (%p204) target = $region12
      $region11: #{tpu_custom_call.1} parent=5 // pred_region
        %s208 = ssub.s32 %s16, 1
        // Predicated region
        $region13: #{tpu_custom_call.1} parent=11 // pred_check
          %p209 = pneg %p63
        $region14: #{tpu_custom_call.1} parent=11 // pred_check_branch
          %211 = sbr.rel (%p209) target = $region16
        $region15: #{tpu_custom_call.1} parent=11 // pred_region
          _
        $region16: #{tpu_custom_call.1} parent=11 // pred_fallthru
          _
        // Predicated region
        $region17: #{tpu_custom_call.1} parent=11 // pred_check
          %p212 = pneg %p84
        $region18: #{tpu_custom_call.1} parent=11 // pred_check_branch
          %214 = sbr.rel (%p212) target = $region20
        $region19: #{tpu_custom_call.1} parent=11 // pred_region
          _
        $region20: #{tpu_custom_call.1} parent=11 // pred_fallthru
          _
        // Predicated region
        $region21: #{tpu_custom_call.1} parent=11 // pred_check
          %p215 = pneg %p105
        $region22: #{tpu_custom_call.1} parent=11 // pred_check_branch
          %217 = sbr.rel (%p215) target = $region24
        $region23: #{tpu_custom_call.1} parent=11 // pred_region
          _
        $region24: #{tpu_custom_call.1} parent=11 // pred_fallthru
          _
        // Predicated region
        $region25: #{tpu_custom_call.1} parent=11 // pred_check
          %p218 = pneg %p126
        $region26: #{tpu_custom_call.1} parent=11 // pred_check_branch
          %220 = sbr.rel (%p218) target = $region28
        $region27: #{tpu_custom_call.1} parent=11 // pred_region
          _
        $region28: #{tpu_custom_call.1} parent=11 // pred_fallthru
          _
        // Predicated region
        $region29: #{tpu_custom_call.1} parent=11 // pred_check
          %p221 = pneg %p147
        $region30: #{tpu_custom_call.1} parent=11 // pred_check_branch
          %223 = sbr.rel (%p221) target = $region32
        $region31: #{tpu_custom_call.1} parent=11 // pred_region
          _
        $region32: #{tpu_custom_call.1} parent=11 // pred_fallthru
          _
        // Predicated region
        $region33: #{tpu_custom_call.1} parent=11 // pred_check
          %p224 = pneg %p168
        $region34: #{tpu_custom_call.1} parent=11 // pred_check_branch
          %226 = sbr.rel (%p224) target = $region36
        $region35: #{tpu_custom_call.1} parent=11 // pred_region
          _
        $region36: #{tpu_custom_call.1} parent=11 // pred_fallthru
          _
      $region12: #{tpu_custom_call.1} parent=5 // pred_fallthru
        _
      %p227 = scmp.lt.s32.totalorder %s16, 2
      // Predicated region
      $region37: #{tpu_custom_call.1} parent=5 // pred_check
        %p228 = pneg %p227
      $region38: #{tpu_custom_call.1} parent=5 // pred_check_branch
        %230 = sbr.rel (%p228) target = $region40
      $region39: #{tpu_custom_call.1} parent=5 // pred_region
        // Predicated region
        $region41: #{tpu_custom_call.1} parent=39 // pred_check
          %p231 = pneg %p36
        $region42: #{tpu_custom_call.1} parent=39 // pred_check_branch
          %233 = sbr.rel (%p231) target = $region44
        $region43: #{tpu_custom_call.1} parent=39 // pred_region
          %s234 = smul.u32 4, %s16
          %p235 = scmp.lt.s32.totalorder %s234, 7
          %s236 = scalar_select %p235, %s234, 7
          %s237 = smul.addr %s236, 4
          %s238 = scalar_lea.vmem %s0, %s237
          %s239 = smul.u32 4, %s16
        $region44: #{tpu_custom_call.1} parent=39 // pred_fallthru
          _
      $region40: #{tpu_custom_call.1} parent=5 // pred_fallthru
        _
      %p240 = scmp.le.s32.totalorder 1, %s16
      %p241 = scmp.lt.s32.totalorder %s16, 3
      %p242 = pnand %p240, %p241
      %p243 = pneg %p242
      // Predicated region
      $region45: #{tpu_custom_call.1} parent=5 // pred_check
        _
      $region46: #{tpu_custom_call.1} parent=5 // pred_check_branch
        %245 = sbr.rel (%p242) target = $region48
      $region47: #{tpu_custom_call.1} parent=5 // pred_region
        %s246 = ssub.s32 %s16, 1
        %s247 = smul.u32 4, %s21
        %p248 = scmp.lt.s32.totalorder %s247, 7
        %s249 = scalar_select %p248, %s247, 7
        %s250 = smul.addr %s249, 4
        %s251 = scalar_lea.vmem %s0, %s250
        %p252 = pneg %p42
        %p253 = pneg %p39
        %p254 = pneg %p63
        %p255 = pneg %p60
        %p256 = pneg %p84
        %p257 = pneg %p81
        %p258 = pneg %p105
        %p259 = pneg %p102
        %p260 = pneg %p126
        %p261 = pneg %p123
        %p262 = pneg %p147
        %p263 = pneg %p144
        %p264 = pneg %p168
        %p265 = pneg %p165
        %p266 = pneg %p194
        %p267 = pneg %p191
        %s268 = sand.u32 %s181, 1
        %s269 = scalar_lea.sflag [#allocation3], %s268
        %s270 = sand.u32 %s181, 1
        %s271 = smul.addr %s270, 128
        %s272 = scalar_lea.vmem [#allocation2], %s271
        %s273 = smul.u32 4, %s21
        %p274 = scmp.lt.s32.totalorder %s273, 7
        %s275 = scalar_select %p274, %s273, 7
        %s276 = smul.addr %s275, 4
        %s277 = scalar_lea.vmem %s0, %s276
        %s278 = smul.u32 4, %s21
        %s279 = smul.u32 4, %s21
        %v280 = vld [vmem:[%s277] sm:$0xff]
        %v281 = vld [vmem:[%s277 + $0x8] sm:$0xff]
        %v282 = vld [vmem:[%s1] sm:$0xf]
        %v283 = vld [vmem:[%s2] sm:$0xf]
        %285 = vset.pattern.permute.xlu0 0
        %286 = vperm.xlu0 %285, %v283
        %v287 = vpop.permute.xlu0 %286
        %v291 = vcombine.high %v280, %v280
        %v292 = vcombine.high %v281, %v281
        %vm293 = vcmask 31744
        %v295 = vsel %vm293, %v282, 0
        %vm297 = vcmask 1043456
        %v298 = vsel %vm297, %v280, 0
        %v300 = vsel %vm297, %v291, 0
        %v302 = vsel %vm297, %v281, 0
        %v304 = vsel %vm297, %v292, 0
        %306 = vmatprep.subr.mxu0 0.0
        %307 = vmatpush1.msra.mxu0 0.0
        %308 = vmatprep.subr.mxu0 0.0
        %309 = vmatpush1.msra.mxu0 0.0
        %310 = vmatprep.subr.mxu0 0.0
        %311 = vmatpush1.msra.mxu0 0.0
        %312 = vmatprep.subr.mxu0 0.0
        %313 = vmatpush1.msra.mxu0 0.0
        %314 = vmatprep.subr.mxu0 0.0
        %315 = vmatpush1.msra.mxu0 0.0
        %316 = vmatprep.subr.mxu0 0.0
        %317 = vmatpush1.msra.mxu0 0.0
        %318 = vmatprep.subr.mxu0 0.0
        %319 = vmatpush1.msra.mxu0 0.0
        %320 = vmatprep.subr.mxu0 0.0
        %321 = vmatpush1.msra.mxu0 0.0
        %322 = vmatprep.subr.mxu0 0.0
        %323 = vmatpush1.msra.mxu0 0.0
        %324 = vmatprep.subr.mxu0 0.0
        %325 = vmatpush1.msra.mxu0 0.0
        %326 = vmatprep.subr.mxu0 0.0
        %327 = vmatpush1.msra.mxu0 0.0
        %328 = vmatprep.subr.mxu0 0.0
        %329 = vmatpush1.msra.mxu0 0.0
        %330 = vmatprep.subr.mxu0 0.0
        %331 = vmatpush1.msra.mxu0 0.0
        %332 = vmatprep.subr.mxu0 0.0
        %333 = vmatpush1.msra.mxu0 0.0
        %334 = vmatprep.subr.mxu0 0.0
        %335 = vmatpush1.msra.mxu0 0.0
        %336 = vmatprep.subr.mxu0 %v300
        %337 = vmatpush1.msra.mxu0 %v298
        %338 = vmatprep.subr.mxu0 0.0
        %339 = vmatpush2.msra.mxu0 0.0
        %340 = vmatprep.subr.mxu0 0.0
        %341 = vmatpush2.msra.mxu0 0.0
        %342 = vmatprep.subr.mxu0 0.0
        %343 = vmatpush2.msra.mxu0 0.0
        %344 = vmatprep.subr.mxu0 0.0
        %345 = vmatpush2.msra.mxu0 0.0
        %346 = vmatprep.subr.mxu0 0.0
        %347 = vmatpush2.msra.mxu0 0.0
        %348 = vmatprep.subr.mxu0 0.0
        %349 = vmatpush2.msra.mxu0 0.0
        %350 = vmatprep.subr.mxu0 0.0
        %351 = vmatpush2.msra.mxu0 0.0
        %352 = vmatprep.subr.mxu0 0.0
        %353 = vmatpush2.msra.mxu0 0.0
        %354 = vmatprep.subr.mxu0 0.0
        %355 = vmatpush2.msra.mxu0 0.0
        %356 = vmatprep.subr.mxu0 0.0
        %357 = vmatpush2.msra.mxu0 0.0
        %358 = vmatprep.subr.mxu0 0.0
        %359 = vmatpush2.msra.mxu0 0.0
        %360 = vmatprep.subr.mxu0 0.0
        %361 = vmatpush2.msra.mxu0 0.0
        %362 = vmatprep.subr.mxu0 0.0
        %363 = vmatpush2.msra.mxu0 0.0
        %364 = vmatprep.subr.mxu0 0.0
        %365 = vmatpush2.msra.mxu0 0.0
        %366 = vmatprep.subr.mxu0 0.0
        %367 = vmatpush2.msra.mxu0 0.0
        %368 = vmatprep.subr.mxu0 0.0
        %369 = vmatpush2.msra.mxu0 0.0
        %370 = vmatprep.mubr.f32.mxu0 0.0
        %371 = vmatmul.mubr.f32.gmra.mxu0 %v295
        %v372 = vpop.f32.mrf.mxu0
        %v373 = vadd.f32 %v287, %v372
        %v374 = vpop.f32.mrf.mxu0
        %v375 = vadd.f32 %v287, %v374
        %376 = vdwg.mxu0
        %377 = vmatprep.subr.mxu0 0.0
        %378 = vmatpush1.msra.mxu0 0.0
        %379 = vmatprep.subr.mxu0 0.0
        %380 = vmatpush1.msra.mxu0 0.0
        %381 = vmatprep.subr.mxu0 0.0
        %382 = vmatpush1.msra.mxu0 0.0
        %383 = vmatprep.subr.mxu0 0.0
        %384 = vmatpush1.msra.mxu0 0.0
        %385 = vmatprep.subr.mxu0 0.0
        %386 = vmatpush1.msra.mxu0 0.0
        %387 = vmatprep.subr.mxu0 0.0
        %388 = vmatpush1.msra.mxu0 0.0
        %389 = vmatprep.subr.mxu0 0.0
        %390 = vmatpush1.msra.mxu0 0.0
        %391 = vmatprep.subr.mxu0 0.0
        %392 = vmatpush1.msra.mxu0 0.0
        %393 = vmatprep.subr.mxu0 0.0
        %394 = vmatpush1.msra.mxu0 0.0
        %395 = vmatprep.subr.mxu0 0.0
        %396 = vmatpush1.msra.mxu0 0.0
        %397 = vmatprep.subr.mxu0 0.0
        %398 = vmatpush1.msra.mxu0 0.0
        %399 = vmatprep.subr.mxu0 0.0
        %400 = vmatpush1.msra.mxu0 0.0
        %401 = vmatprep.subr.mxu0 0.0
        %402 = vmatpush1.msra.mxu0 0.0
        %403 = vmatprep.subr.mxu0 0.0
        %404 = vmatpush1.msra.mxu0 0.0
        %405 = vmatprep.subr.mxu0 0.0
        %406 = vmatpush1.msra.mxu0 0.0
        %407 = vmatprep.subr.mxu0 %v304
        %408 = vmatpush1.msra.mxu0 %v302
        %409 = vmatprep.subr.mxu0 0.0
        %410 = vmatpush2.msra.mxu0 0.0
        %411 = vmatprep.subr.mxu0 0.0
        %412 = vmatpush2.msra.mxu0 0.0
        %413 = vmatprep.subr.mxu0 0.0
        %414 = vmatpush2.msra.mxu0 0.0
        %415 = vmatprep.subr.mxu0 0.0
        %416 = vmatpush2.msra.mxu0 0.0
        %417 = vmatprep.subr.mxu0 0.0
        %418 = vmatpush2.msra.mxu0 0.0
        %419 = vmatprep.subr.mxu0 0.0
        %420 = vmatpush2.msra.mxu0 0.0
        %421 = vmatprep.subr.mxu0 0.0
        %422 = vmatpush2.msra.mxu0 0.0
        %423 = vmatprep.subr.mxu0 0.0
        %424 = vmatpush2.msra.mxu0 0.0
        %425 = vmatprep.subr.mxu0 0.0
        %426 = vmatpush2.msra.mxu0 0.0
        %427 = vmatprep.subr.mxu0 0.0
        %428 = vmatpush2.msra.mxu0 0.0
        %429 = vmatprep.subr.mxu0 0.0
        %430 = vmatpush2.msra.mxu0 0.0
        %431 = vmatprep.subr.mxu0 0.0
        %432 = vmatpush2.msra.mxu0 0.0
        %433 = vmatprep.subr.mxu0 0.0
        %434 = vmatpush2.msra.mxu0 0.0
        %435 = vmatprep.subr.mxu0 0.0
        %436 = vmatpush2.msra.mxu0 0.0
        %437 = vmatprep.subr.mxu0 0.0
        %438 = vmatpush2.msra.mxu0 0.0
        %439 = vmatprep.subr.mxu0 0.0
        %440 = vmatpush2.msra.mxu0 0.0
        %441 = vmatprep.mubr.f32.mxu0 0.0
        %442 = vmatmul.mubr.f32.gmra.mxu0 %v295
        %v443 = vpop.f32.mrf.mxu0
        %v444 = vadd.f32 %v287, %v443
        %v445 = vpop.f32.mrf.mxu0
        %v446 = vadd.f32 %v287, %v445
        %447 = vdwg.mxu0
        %v448 = vld [vmem:[%s3] sm:$0xf]
        %450 = vset.pattern.permute.xlu0 0
        %451 = vperm.xlu0 %450, %v448
        %v452 = vpop.permute.xlu0 %451
        %v454 = vmul.f32 %v373, %v452
        %v455 = vmul.f32 %v375, %v452
        %v456 = vmul.f32 %v444, %v452
        %v457 = vmul.f32 %v446, %v452
        %v458 = vld [vmem:[%s4] sm:$0xf]
        %460 = vset.pattern.permute.xlu0 0
        %461 = vperm.xlu0 %460, %v458
        %v462 = vpop.permute.xlu0 %461
        %v464 = vadd.f32 %v454, %v462
        %v465 = vadd.f32 %v455, %v462
        %v466 = vadd.f32 %v456, %v462
        %v467 = vadd.f32 %v457, %v462
        %vm468 = vcmp.ge.f32.partialorder %v464, 0.0
        %vm469 = vcmp.ge.f32.partialorder %v465, 0.0
        %vm470 = vcmp.ge.f32.partialorder %v466, 0.0
        %vm471 = vcmp.ge.f32.partialorder %v467, 0.0
        %v472 = vmul.f32 %v464, 0.01
        %v473 = vmul.f32 %v465, 0.01
        %v474 = vmul.f32 %v466, 0.01
        %v475 = vmul.f32 %v467, 0.01
        %v476 = vsel %vm468, %v464, %v472
        %v477 = vsel %vm469, %v465, %v473
        %v478 = vsel %vm470, %v466, %v474
        %v479 = vsel %vm471, %v467, %v475
        %v480 = vld [vmem:[%s5] sm:$0xff]
        %v481 = vld [vmem:[%s5 + $0x8] sm:$0xff]
        %v482 = vld [vmem:[%s5 + $0x10] sm:$0xff]
        %v483 = vld [vmem:[%s5 + $0x18] sm:$0xff]
        %v484 = vld [vmem:[%s6] sm:$0xff]
        %v485 = vld [vmem:[%s6 + $0x8] sm:$0xff]
        %v486 = vld [vmem:[%s6 + $0x10] sm:$0xff]
        %v487 = vld [vmem:[%s6 + $0x18] sm:$0xff]
        %489 = vset.pattern.permute.xlu0 0
        %490 = vperm.xlu0 %489, %v484
        %v491 = vpop.permute.xlu0 %490
        %494 = vset.pattern.permute.xlu0 0
        %495 = vperm.xlu0 %494, %v485
        %v496 = vpop.permute.xlu0 %495
        %499 = vset.pattern.permute.xlu0 0
        %500 = vperm.xlu0 %499, %v486
        %v501 = vpop.permute.xlu0 %500
        %504 = vset.pattern.permute.xlu0 0
        %505 = vperm.xlu0 %504, %v487
        %v506 = vpop.permute.xlu0 %505
        %v509 = vsel %vm293, %v480, 0
        %v512 = vsel %vm293, %v481, 0
        %v515 = vsel %vm293, %v482, 0
        %v518 = vsel %vm293, %v483, 0
        %v521 = vsel %vm297, %v476, 0
        %v524 = vsel %vm297, %v477, 0
        %v527 = vsel %vm297, %v478, 0
        %v530 = vsel %vm297, %v479, 0
        %532 = vmatprep.subr.mxu0 0.0
        %533 = vmatpush1.msra.mxu0 0.0
        %534 = vmatprep.subr.mxu0 0.0
        %535 = vmatpush1.msra.mxu0 0.0
        %536 = vmatprep.subr.mxu0 0.0
        %537 = vmatpush1.msra.mxu0 0.0
        %538 = vmatprep.subr.mxu0 0.0
        %539 = vmatpush1.msra.mxu0 0.0
        %540 = vmatprep.subr.mxu0 0.0
        %541 = vmatpush1.msra.mxu0 0.0
        %542 = vmatprep.subr.mxu0 0.0
        %543 = vmatpush1.msra.mxu0 0.0
        %544 = vmatprep.subr.mxu0 0.0
        %545 = vmatpush1.msra.mxu0 0.0
        %546 = vmatprep.subr.mxu0 0.0
        %547 = vmatpush1.msra.mxu0 0.0
        %548 = vmatprep.subr.mxu0 0.0
        %549 = vmatpush1.msra.mxu0 0.0
        %550 = vmatprep.subr.mxu0 0.0
        %551 = vmatpush1.msra.mxu0 0.0
        %552 = vmatprep.subr.mxu0 0.0
        %553 = vmatpush1.msra.mxu0 0.0
        %554 = vmatprep.subr.mxu0 0.0
        %555 = vmatpush1.msra.mxu0 0.0
        %556 = vmatprep.subr.mxu0 0.0
        %557 = vmatpush1.msra.mxu0 0.0
        %558 = vmatprep.subr.mxu0 0.0
        %559 = vmatpush1.msra.mxu0 0.0
        %560 = vmatprep.subr.mxu0 0.0
        %561 = vmatpush1.msra.mxu0 0.0
        %562 = vmatprep.subr.mxu0 %v524
        %563 = vmatpush1.msra.mxu0 %v521
        %564 = vmatprep.subr.mxu0 0.0
        %565 = vmatpush2.msra.mxu0 0.0
        %566 = vmatprep.subr.mxu0 0.0
        %567 = vmatpush2.msra.mxu0 0.0
        %568 = vmatprep.subr.mxu0 0.0
        %569 = vmatpush2.msra.mxu0 0.0
        %570 = vmatprep.subr.mxu0 0.0
        %571 = vmatpush2.msra.mxu0 0.0
        %572 = vmatprep.subr.mxu0 0.0
        %573 = vmatpush2.msra.mxu0 0.0
        %574 = vmatprep.subr.mxu0 0.0
        %575 = vmatpush2.msra.mxu0 0.0
        %576 = vmatprep.subr.mxu0 0.0
        %577 = vmatpush2.msra.mxu0 0.0
        %578 = vmatprep.subr.mxu0 0.0
        %579 = vmatpush2.msra.mxu0 0.0
        %580 = vmatprep.subr.mxu0 0.0
        %581 = vmatpush2.msra.mxu0 0.0
        %582 = vmatprep.subr.mxu0 0.0
        %583 = vmatpush2.msra.mxu0 0.0
        %584 = vmatprep.subr.mxu0 0.0
        %585 = vmatpush2.msra.mxu0 0.0
        %586 = vmatprep.subr.mxu0 0.0
        %587 = vmatpush2.msra.mxu0 0.0
        %588 = vmatprep.subr.mxu0 0.0
        %589 = vmatpush2.msra.mxu0 0.0
        %590 = vmatprep.subr.mxu0 0.0
        %591 = vmatpush2.msra.mxu0 0.0
        %592 = vmatprep.subr.mxu0 0.0
        %593 = vmatpush2.msra.mxu0 0.0
        %594 = vmatprep.subr.mxu0 0.0
        %595 = vmatpush2.msra.mxu0 0.0
        %596 = vmatprep.mubr.f32.mxu0 0.0
        %597 = vmatmul.mubr.f32.gmra.mxu0 %v509
        %v598 = vpop.f32.mrf.mxu0
        %v599 = vadd.f32 %v491, %v598
        %v600 = vpop.f32.mrf.mxu0
        %v601 = vadd.f32 %v491, %v600
        %602 = vmatprep.mubr.f32.mxu0 0.0
        %603 = vmatmul.mubr.f32.gmra.mxu0 %v512
        %v604 = vpop.f32.mrf.mxu0
        %v605 = vadd.f32 %v496, %v604
        %v606 = vpop.f32.mrf.mxu0
        %v607 = vadd.f32 %v496, %v606
        %608 = vmatprep.mubr.f32.mxu0 0.0
        %609 = vmatmul.mubr.f32.gmra.mxu0 %v515
        %v610 = vpop.f32.mrf.mxu0
        %v611 = vadd.f32 %v501, %v610
        %v612 = vpop.f32.mrf.mxu0
        %v613 = vadd.f32 %v501, %v612
        %614 = vmatprep.mubr.f32.mxu0 0.0
        %615 = vmatmul.mubr.f32.gmra.mxu0 %v518
        %v616 = vpop.f32.mrf.mxu0
        %v617 = vadd.f32 %v506, %v616
        %v618 = vpop.f32.mrf.mxu0
        %v619 = vadd.f32 %v506, %v618
        %620 = vdwg.mxu0
        %621 = vmatprep.subr.mxu0 0.0
        %622 = vmatpush1.msra.mxu0 0.0
        %623 = vmatprep.subr.mxu0 0.0
        %624 = vmatpush1.msra.mxu0 0.0
        %625 = vmatprep.subr.mxu0 0.0
        %626 = vmatpush1.msra.mxu0 0.0
        %627 = vmatprep.subr.mxu0 0.0
        %628 = vmatpush1.msra.mxu0 0.0
        %629 = vmatprep.subr.mxu0 0.0
        %630 = vmatpush1.msra.mxu0 0.0
        %631 = vmatprep.subr.mxu0 0.0
        %632 = vmatpush1.msra.mxu0 0.0
        %633 = vmatprep.subr.mxu0 0.0
        %634 = vmatpush1.msra.mxu0 0.0
        %635 = vmatprep.subr.mxu0 0.0
        %636 = vmatpush1.msra.mxu0 0.0
        %637 = vmatprep.subr.mxu0 0.0
        %638 = vmatpush1.msra.mxu0 0.0
        %639 = vmatprep.subr.mxu0 0.0
        %640 = vmatpush1.msra.mxu0 0.0
        %641 = vmatprep.subr.mxu0 0.0
        %642 = vmatpush1.msra.mxu0 0.0
        %643 = vmatprep.subr.mxu0 0.0
        %644 = vmatpush1.msra.mxu0 0.0
        %645 = vmatprep.subr.mxu0 0.0
        %646 = vmatpush1.msra.mxu0 0.0
        %647 = vmatprep.subr.mxu0 0.0
        %648 = vmatpush1.msra.mxu0 0.0
        %649 = vmatprep.subr.mxu0 0.0
        %650 = vmatpush1.msra.mxu0 0.0
        %651 = vmatprep.subr.mxu0 %v530
        %652 = vmatpush1.msra.mxu0 %v527
        %653 = vmatprep.subr.mxu0 0.0
        %654 = vmatpush2.msra.mxu0 0.0
        %655 = vmatprep.subr.mxu0 0.0
        %656 = vmatpush2.msra.mxu0 0.0
        %657 = vmatprep.subr.mxu0 0.0
        %658 = vmatpush2.msra.mxu0 0.0
        %659 = vmatprep.subr.mxu0 0.0
        %660 = vmatpush2.msra.mxu0 0.0
        %661 = vmatprep.subr.mxu0 0.0
        %662 = vmatpush2.msra.mxu0 0.0
        %663 = vmatprep.subr.mxu0 0.0
        %664 = vmatpush2.msra.mxu0 0.0
        %665 = vmatprep.subr.mxu0 0.0
        %666 = vmatpush2.msra.mxu0 0.0
        %667 = vmatprep.subr.mxu0 0.0
        %668 = vmatpush2.msra.mxu0 0.0
        %669 = vmatprep.subr.mxu0 0.0
        %670 = vmatpush2.msra.mxu0 0.0
        %671 = vmatprep.subr.mxu0 0.0
        %672 = vmatpush2.msra.mxu0 0.0
        %673 = vmatprep.subr.mxu0 0.0
        %674 = vmatpush2.msra.mxu0 0.0
        %675 = vmatprep.subr.mxu0 0.0
        %676 = vmatpush2.msra.mxu0 0.0
        %677 = vmatprep.subr.mxu0 0.0
        %678 = vmatpush2.msra.mxu0 0.0
        %679 = vmatprep.subr.mxu0 0.0
        %680 = vmatpush2.msra.mxu0 0.0
        %681 = vmatprep.subr.mxu0 0.0
        %682 = vmatpush2.msra.mxu0 0.0
        %683 = vmatprep.subr.mxu0 0.0
        %684 = vmatpush2.msra.mxu0 0.0
        %685 = vmatprep.mubr.f32.mxu0 0.0
        %686 = vmatmul.mubr.f32.gmra.mxu0 %v509
        %v687 = vpop.f32.mrf.mxu0
        %v688 = vadd.f32 %v491, %v687
        %v689 = vpop.f32.mrf.mxu0
        %v690 = vadd.f32 %v491, %v689
        %691 = vmatprep.mubr.f32.mxu0 0.0
        %692 = vmatmul.mubr.f32.gmra.mxu0 %v512
        %v693 = vpop.f32.mrf.mxu0
        %v694 = vadd.f32 %v496, %v693
        %v695 = vpop.f32.mrf.mxu0
        %v696 = vadd.f32 %v496, %v695
        %697 = vmatprep.mubr.f32.mxu0 0.0
        %698 = vmatmul.mubr.f32.gmra.mxu0 %v515
        %v699 = vpop.f32.mrf.mxu0
        %v700 = vadd.f32 %v501, %v699
        %v701 = vpop.f32.mrf.mxu0
        %v702 = vadd.f32 %v501, %v701
        %703 = vmatprep.mubr.f32.mxu0 0.0
        %704 = vmatmul.mubr.f32.gmra.mxu0 %v518
        %v705 = vpop.f32.mrf.mxu0
        %v706 = vadd.f32 %v506, %v705
        %v707 = vpop.f32.mrf.mxu0
        %v708 = vadd.f32 %v506, %v707
        %709 = vdwg.mxu0
        %710 = vst [vmem:[%s272] sm:$0xff] %v599
        %711 = vst [vmem:[%s272 + $0x8] sm:$0xff] %v601
        %712 = vst [vmem:[%s272 + $0x10] sm:$0xff] %v688
        %713 = vst [vmem:[%s272 + $0x18] sm:$0xff] %v690
        %714 = vst [vmem:[%s272 + $0x20] sm:$0xff] %v605
        %715 = vst [vmem:[%s272 + $0x28] sm:$0xff] %v607
        %716 = vst [vmem:[%s272 + $0x30] sm:$0xff] %v694
        %717 = vst [vmem:[%s272 + $0x38] sm:$0xff] %v696
        %718 = vst [vmem:[%s272 + $0x40] sm:$0xff] %v611
        %719 = vst [vmem:[%s272 + $0x48] sm:$0xff] %v613
        %720 = vst [vmem:[%s272 + $0x50] sm:$0xff] %v700
        %721 = vst [vmem:[%s272 + $0x58] sm:$0xff] %v702
        %722 = vst [vmem:[%s272 + $0x60] sm:$0xff] %v617
        %723 = vst [vmem:[%s272 + $0x68] sm:$0xff] %v619
        %724 = vst [vmem:[%s272 + $0x70] sm:$0xff] %v706
        %725 = vst [vmem:[%s272 + $0x78] sm:$0xff] %v708
        %s726 = sand.u32 %s181, 1
        %s727 = scalar_lea.sflag [#allocation3], %s726
        %s728 = sand.u32 %s181, 1
        %s729 = smul.addr %s728, 128
        %s730 = scalar_lea.vmem [#allocation2], %s729
        // Predicated region
        $region49: #{tpu_custom_call.1} parent=47 // pred_check
          %p731 = pneg %p191
        $region50: #{tpu_custom_call.1} parent=47 // pred_check_branch
          %733 = sbr.rel (%p731) target = $region52
        $region51: #{tpu_custom_call.1} parent=47 // pred_region
          %s734 = smul.u32 4, %s21
          %s736 = ssub.s32 2048, 2048
          %737 = vsyncadd %s727, %s736
          %s738 = smul.addr %s734, 128
          %s739 = scalar_lea.hbm %s7, %s738
          %s740 = sshll.u32 %s730, 4
          %s741 = int_to_ptr.vmem [resolvable:$true] %s740
          %746 = dma.vmem_to_hbm [thread:$0]  %s741, 2048, %s739, %s727, 512, 1024, 32
        $region52: #{tpu_custom_call.1} parent=47 // pred_fallthru
          _
      $region48: #{tpu_custom_call.1} parent=5 // pred_fallthru
        _
      %p747 = scmp.le.s32.totalorder 2, %s16
      // Predicated region
      $region53: #{tpu_custom_call.1} parent=5 // pred_check
        %p748 = pneg %p747
      $region54: #{tpu_custom_call.1} parent=5 // pred_check_branch
        %750 = sbr.rel (%p748) target = $region56
      $region55: #{tpu_custom_call.1} parent=5 // pred_region
        %s751 = ssub.s32 %s16, 2
        // Predicated region
        $region57: #{tpu_custom_call.1} parent=55 // pred_check
          %p752 = pneg %p197
        $region58: #{tpu_custom_call.1} parent=55 // pred_check_branch
          %754 = sbr.rel (%p752) target = $region60
        $region59: #{tpu_custom_call.1} parent=55 // pred_region
          %s755 = sand.u32 %s182, 1
          %s756 = scalar_lea.sflag [#allocation3], %s755
          %s757 = sand.u32 %s182, 1
          %s758 = smul.addr %s757, 128
          %s759 = scalar_lea.vmem [#allocation2], %s758
          %760 = dma.done %s756, 2048
        $region60: #{tpu_custom_call.1} parent=55 // pred_fallthru
          _
      $region56: #{tpu_custom_call.1} parent=5 // pred_fallthru
        _
    $region6: #{tpu_custom_call.1} parent=1 // loop_footer
      %s20 = sadd.s32 1, %s16
    $region7: #{tpu_custom_call.1} parent=1 // loop_footer_branch
      %15 = sbr.rel target = $region3
    $region8: #{tpu_custom_call.1} parent=1 // loop_exit
      _
    %761 = vsyncpa [#allocation3], 1
    %s762 = scalar_lea.sflag [#allocation3], 1
    %763 = vsyncpa %s762, 1

</llo_original>
